<compile_context>
chip_gen: v7x
topology: tpu7x:2x2x1
jax: 0.10.0
libtpu: 0.0.40
codegen_flags: <defaults>
</compile_context>

<pallas_src>
import functools

import jax
import jax.numpy as jnp
from jax.experimental import pallas as pl
from jax.experimental.pallas import tpu as pltpu


def _implicit_a_kernel(x_ref, b_ref, o_ref, *, tile_m):
    # x: (TILE_M, TILE_K); b: (MP, 1) VMEM-resident across all grid steps.
    row0 = pl.multiple_of(pl.program_id(0) * tile_m, tile_m)
    o_ref[...] = x_ref[...] + b_ref[pl.ds(row0, tile_m), :]


def _round_up(v, m):
    return (v + m - 1) // m * m


def _sublane(dtype):
    # Sub-32-bit dtypes pack along sublanes: 16 rows for 2-byte, 32 for 1-byte.
    return {4: 8, 2: 16, 1: 32}.get(jnp.dtype(dtype).itemsize, 8)


_TILE_BUDGET_BYTES = 4 * 1024 * 1024  # per-tile cap; 4 pipelined bufs <= 16 MiB


def _choose_tiles(M, K, itemsize, sub):
    # Lane axis: keep the full K when a `sub`-row slab fits the byte budget,
    # otherwise chunk K in multiples of 128 lanes.
    if sub * K * itemsize <= _TILE_BUDGET_BYTES:
        tile_k = K
    else:
        tile_k = max(128, (_TILE_BUDGET_BYTES // (sub * itemsize)) // 128 * 128)
    # Row axis: as many rows as fit the budget, rounded to a sublane multiple.
    tile_m = max(sub, (_TILE_BUDGET_BYTES // (tile_k * itemsize)) // sub * sub)
    tile_m = min(tile_m, _round_up(M, sub))
    # Keep >= 4 grid steps when the problem allows, so megacore chips
    # (v7x: 2 TensorCores) can split the "parallel" grid.
    if pl.cdiv(K, tile_k) * pl.cdiv(M, tile_m) < 4:
        tile_m = min(tile_m, max(sub, _round_up(pl.cdiv(M, 4), sub)))
    return tile_m, tile_k


def implicit_a_forward(implicit, x):
    """ImplicitA.forward: implicit (1, C, 1, 1) + x (N, C, H, W)."""
    N, C, H, W = x.shape
    M, K = N * C, H * W
    itemsize = jnp.dtype(x.dtype).itemsize
    sub = _sublane(x.dtype)

    tile_m, tile_k = _choose_tiles(M, K, itemsize, sub)
    n_m = pl.cdiv(M, tile_m)
    n_k = pl.cdiv(K, tile_k)
    mp = n_m * tile_m  # bias rows padded so the in-kernel slice stays in bounds

    # Lane-dense view: rows = (n, c), lanes = flattened spatial.  No padding
    # or slicing of x itself (that would be extra full HBM passes).
    xr = x.reshape(M, K)
    # One bias scalar per row (row n*C + c -> implicit[c]); padding this tiny
    # (M, 1) vector by < tile_m rows is negligible.
    bias = jnp.tile(implicit.reshape(C, 1).astype(x.dtype), (N, 1))
    bias = jnp.pad(bias, ((0, mp - M), (0, 0)))

    out = pl.pallas_call(
        functools.partial(_implicit_a_kernel, tile_m=tile_m),
        out_shape=jax.ShapeDtypeStruct((M, K), x.dtype),
        grid=(n_m, n_k),
        in_specs=[
            pl.BlockSpec((tile_m, tile_k), lambda i, j: (i, j)),
            pl.BlockSpec((mp, 1), lambda i, j: (0, 0)),  # VMEM-resident bias
        ],
        out_specs=pl.BlockSpec((tile_m, tile_k), lambda i, j: (i, j)),
        input_output_aliases={0: 0},  # in-place add over x (donate x upstream)
        cost_estimate=pl.CostEstimate(
            flops=M * K,
            transcendentals=0,
            bytes_accessed=2 * M * K * itemsize + mp * itemsize),
        compiler_params=pltpu.CompilerParams(
            dimension_semantics=("parallel", "parallel"),
            vmem_limit_bytes=48 << 20),
    )(xr, bias)

    return out.reshape(N, C, H, W)


if __name__ == "__main__":
    key = jax.random.PRNGKey(0)
    k_imp, k_x = jax.random.split(key)

    N, C, H, W = 2, 4, 16, 16
    # nn.Parameter(torch.zeros(1, C, 1, 1)) initialized with normal(std=0.02).
    implicit = 0.02 * jax.random.normal(k_imp, (1, C, 1, 1), jnp.float32)
    x = jax.random.normal(k_x, (N, C, H, W), jnp.float32)

    # Pure-JAX reference, computed BEFORE the call since x is donated below.
    ref = implicit + x

    fwd = jax.jit(implicit_a_forward, donate_argnums=(1,))
    out = jax.block_until_ready(fwd(implicit, x))
    assert out.shape == (N, C, H, W), out.shape

    err = float(jnp.max(jnp.abs(out - ref)))
    assert jnp.allclose(out, ref, rtol=1e-6, atol=1e-6), f"max abs err {err}"

    print("KERNEL_OK")
</pallas_src>

<mosaic_0001>
module attributes {stable_mosaic.version = 11 : i64} {
  func.func @_implicit_a_kernel(%arg0: i32, %arg1: i32, %arg2: memref<8x256xf32, #tpu.memory_space<vmem>>, %arg3: memref<8x1xf32, #tpu.memory_space<vmem>>, %arg4: memref<8x256xf32, #tpu.memory_space<vmem>>) attributes {dimension_semantics = [#tpu.dimension_semantics<parallel>, #tpu.dimension_semantics<parallel>], iteration_bounds = array<i64: 1, 1>, scalar_prefetch = 0 : i64, scratch_operands = 0 : i64, tpu.core_type = #tpu.core_type<tc>, window_params = [{transform_indices = @transform_0, window_bounds = array<i64: 8, 256>}, {pipeline_mode = #tpu.pipeline_mode<synchronous>, transform_indices = @transform_1, window_bounds = array<i64: 8, 1>}, {transform_indices = @transform_2, window_bounds = array<i64: 8, 256>}]} {
    %c8_i32 = arith.constant 8 : i32
    %0 = arith.muli %arg0, %c8_i32 : i32
    %1 = tpu.assume_multiple %0, 8 : i32
    %c0 = arith.constant 0 : index
    %c0_0 = arith.constant 0 : index
    %2 = vector.load %arg2[%c0, %c0_0] : memref<8x256xf32, #tpu.memory_space<vmem>>, vector<8x256xf32>
    %3 = arith.index_cast %1 : i32 to index
    %c0_1 = arith.constant 0 : index
    %4 = vector.load %arg3[%3, %c0_1] : memref<8x1xf32, #tpu.memory_space<vmem>>, vector<8x1xf32>
    %5 = vector.broadcast %4 : vector<8x1xf32> to vector<8x256xf32>
    %6 = arith.addf %2, %5 : vector<8x256xf32>
    %c0_2 = arith.constant 0 : index
    %c0_3 = arith.constant 0 : index
    %7 = vector.load %arg4[%c0_2, %c0_3] : memref<8x256xf32, #tpu.memory_space<vmem>>, vector<8x256xf32>
    tpu.vector_store %arg4[%c0_2, %c0_3], %6 {strides = array<i32>} : memref<8x256xf32, #tpu.memory_space<vmem>>, vector<8x256xf32>,
    return
  }
  func.func @transform_0(%arg0: i32, %arg1: i32) -> (i32, i32) {
    %c0_i32 = arith.constant 0 : i32
    return %arg0, %arg1 : i32, i32
  }
  func.func @transform_1(%arg0: i32, %arg1: i32) -> (i32, i32) {
    %c0_i32 = arith.constant 0 : i32
    %c0_i32_0 = arith.constant 0 : i32
    %c0_i32_1 = arith.constant 0 : i32
    return %c0_i32, %c0_i32_0 : i32, i32
  }
  func.func @transform_2(%arg0: i32, %arg1: i32) -> (i32, i32) {
    %c0_i32 = arith.constant 0 : i32
    return %arg0, %arg1 : i32, i32
  }
}

</mosaic_0001>

<llo_original>
// kernel: implicit_a_forward.1
$region0: #{implicit_a_forward.1}
  #allocation0 [shape = 'u32[]', space=smem, size = 0x4, offset = 0x4, fixed_abs, tag = 'smem constant byte address 0x4 - core index']
  #allocation1 [shape = 'u32[144,128]{1,0:T(1,128)}', space=vmem, size = 0x12000, scoped, tag = 'internal scratch']
  %s0 = inlined_call_operand.vmem [shape: f32[8,256], index: 0, kind: input, shape index: {}, may-alias: {0,2}]
  %s1 = inlined_call_operand.vmem [shape: f32[8,1], index: 1, kind: input, shape index: {}]
  %s2 = inlined_call_operand.vmem [shape: f32[8,256], index: 2, kind: output, shape index: {}, may-alias: {0,2}]
  %s3 = sld [smem:[#allocation0]]
  $region18: #{implicit_a_forward.1} parent=0
    _
  %s5 = ssub.s32 1, %s3
  %s6 = scalar_select 0, %s5, %s3
  // Predicated region
  $region2: #{implicit_a_forward.1} parent=0 // pred_check
    _
  $region3: #{implicit_a_forward.1} parent=0 // pred_check_branch
    %8 = sbr.rel (0) target = $region5
  $region4: #{implicit_a_forward.1} parent=0 // pred_region
    _
  $region5: #{implicit_a_forward.1} parent=0 // pred_fallthru
    _
  // Predicated region
  $region6: #{implicit_a_forward.1} parent=0 // pred_check
    _
  $region7: #{implicit_a_forward.1} parent=0 // pred_check_branch
    %10 = sbr.rel (0) target = $region9
  $region8: #{implicit_a_forward.1} parent=0 // pred_region
    _
  $region9: #{implicit_a_forward.1} parent=0 // pred_fallthru
    _
  %s11 = smul.u32 0, 8
  %v12 = vld [vmem:[%s0] sm:$0xff]
  %v13 = vld [vmem:[%s0 + $0x8] sm:$0xff]
  %s14 = scalar_lea.vmem %s1, %s11
  %v15 = vld [vmem:[%s14] sm:$0xff]
  %17 = vset.pattern.permute.xlu0 0
  %18 = vperm.xlu0 %17, %v15
  %v19 = vpop.permute.xlu0 %18
  %v21 = vadd.f32 %v12, %v19
  %v22 = vadd.f32 %v13, %v19
  %23 = vst [vmem:[%s2] sm:$0xff] %v21
  %24 = vst [vmem:[%s2 + $0x8] sm:$0xff] %v22
  // Predicated region
  $region10: #{implicit_a_forward.1} parent=0 // pred_check
    _
  $region11: #{implicit_a_forward.1} parent=0 // pred_check_branch
    %26 = sbr.rel (0) target = $region13
  $region12: #{implicit_a_forward.1} parent=0 // pred_region
    _
  $region13: #{implicit_a_forward.1} parent=0 // pred_fallthru
    _
  // Predicated region
  $region14: #{implicit_a_forward.1} parent=0 // pred_check
    _
  $region15: #{implicit_a_forward.1} parent=0 // pred_check_branch
    %28 = sbr.rel (0) target = $region17
  $region16: #{implicit_a_forward.1} parent=0 // pred_region
    _
  $region17: #{implicit_a_forward.1} parent=0 // pred_fallthru
    _

</llo_original>
